<compile_context>
chip_gen: v7x
topology: tpu7x:2x2x1
jax: 0.10.0
libtpu: 0.0.40
codegen_flags: <defaults>
</compile_context>

<pallas_src>
import functools

import jax
import jax.numpy as jnp
from jax.experimental import pallas as pl
from jax.experimental.pallas import tpu as pltpu


def _triplet_loss_kernel(sim_ref, out_ref, *, margin, rows_total, tile_rows,
                         use_diag_block, compute_dtype):
    """One row-tile: partial sum of relu(pos - neg + margin) over valid rows."""
    i = pl.program_id(0)
    sim = sim_ref[...].astype(compute_dtype)             # (TM, B)
    tm, b = sim.shape

    # Per-tile diagonal mask over the full row slab (needed for neg).
    local_row = jax.lax.broadcasted_iota(jnp.int32, (tm, b), 0)
    col = jax.lax.broadcasted_iota(jnp.int32, (tm, b), 1)
    global_row = local_row + i * tm                       # (TM, B)
    diag_mask = col == global_row

    # negative: per-row max over off-diagonal entries (finite sentinel -> no inf/NaN).
    neg_fill = jnp.asarray(jnp.finfo(compute_dtype).min, compute_dtype)
    neg = jnp.max(jnp.where(diag_mask, neg_fill, sim), axis=1, keepdims=True)  # (TM, 1)

    # positive: the single diagonal entry of each valid row.
    zero = jnp.zeros((), compute_dtype)
    if use_diag_block:
        # Diagonal entries of rows [i*TM, i*TM+TM) can only live in columns
        # [i*TM, i*TM+TM).  Restrict the select+sum to that (TM, TM) column
        # block of the already-resident slab (VMEM load, no extra HBM traffic).
        # Guarded by B % TM == 0 (no OOB) and TM % 128 == 0 (lane-aligned).
        col_start = pl.multiple_of(i * tile_rows, 128)
        blk = sim_ref[:, pl.ds(col_start, tile_rows)].astype(compute_dtype)    # (TM, TM)
        r = jax.lax.broadcasted_iota(jnp.int32, (tm, tile_rows), 0)
        c = jax.lax.broadcasted_iota(jnp.int32, (tm, tile_rows), 1)
        pos = jnp.sum(jnp.where(c == r, blk, zero), axis=1, keepdims=True)     # (TM, 1)
    else:
        pos = jnp.sum(jnp.where(diag_mask, sim, zero), axis=1, keepdims=True)  # (TM, 1)

    # relu(pos - neg + margin) in f32 (pos/neg are exact input values).
    loss = jnp.maximum(
        pos.astype(jnp.float32) - neg.astype(jnp.float32) + jnp.float32(margin),
        0.0)                                                                   # (TM, 1)

    # Rows beyond B (padded rows of a partial last tile) read undefined VMEM;
    # keep this as a select (NOT a multiply-by-mask) so NaN/Inf garbage drops out.
    valid = global_row[:, :1] < rows_total                                     # (TM, 1)
    partial = jnp.sum(jnp.where(valid, loss, 0.0))

    # Lane-dense full-block store of the partial sum (no masked sub-lane vst).
    out_ref[...] = jnp.broadcast_to(partial, out_ref.shape).astype(jnp.float32)


def _round_up(x, m):
    return ((x + m - 1) // m) * m


def _vmem_capacity_bytes():
    try:
        return int(pltpu.get_tpu_info().vmem_capacity_bytes)
    except Exception:
        return 64 * 1024 * 1024        # conservative fallback (v7x per-TC size)


def _native_bf16_vpu():
    """True on bf16-native VALU parts (v6e / v7x); False on v5 and older."""
    try:
        kind = jax.devices()[0].device_kind.lower()
    except Exception:
        return True
    return not any(v in kind for v in ("v2", "v3", "v4", "v5"))


def _pick_tiling(B, itemsize):
    """Pick (tile_rows, num_tiles): VMEM-aware, >= 2 balanced tiles when B > 8."""
    if B <= 8:
        return B, 1
    # Budget for the two double-buffered (TM, B) input slabs: ~30% of physical
    # VMEM (so ~19 MiB on 64 MiB v7x, ~38 MiB on 128 MiB v5e/v6e parts).
    budget = int(0.30 * _vmem_capacity_bytes())
    # Start from ~half the rows so v7x always gets >= 2 grid steps; cap at 512
    # rows (512-row slabs already sit at 85%+ of the HBM roofline).
    tm = min(512, _round_up(pl.cdiv(B, 2), 8))
    while tm > 32 and 2 * tm * B * itemsize > budget:
        tm //= 2
    tm = min(_round_up(tm, 8), B)
    nt = pl.cdiv(B, tm)
    # Prefer an even number of balanced grid steps (v7x megacore sharding).
    if nt > 1 and nt % 2 == 1:
        tm_even = _round_up(pl.cdiv(B, nt + 1), 8)
        if tm_even >= 8:
            tm, nt = tm_even, pl.cdiv(B, tm_even)
    return tm, nt


def triplet_loss(sim_matrix, margin=1.0, tile_rows=None):
    """Pallas TPU implementation of Triplet_Loss.forward."""
    B = sim_matrix.shape[0]
    assert sim_matrix.shape == (B, B), "sim_matrix must be square (B, B)"
    assert B >= 2, "need at least one negative sample per row"

    itemsize = jnp.dtype(sim_matrix.dtype).itemsize
    if tile_rows is None:
        tm, num_tiles = _pick_tiling(B, itemsize)
    else:
        tm = B if tile_rows >= B else max(8, (int(tile_rows) // 8) * 8)
        num_tiles = pl.cdiv(B, tm)

    # Diag-block pos only when the slice is exact (no OOB on a partial last
    # tile) and lane-aligned (no unaligned lane-dim dynamic slice).
    use_diag_block = (tm < B) and (B % tm == 0) and (tm % 128 == 0)

    # bf16-native compute on v6e/v7x; keep the up-front f32 cast on v5e / f32 input.
    if sim_matrix.dtype == jnp.bfloat16 and _native_bf16_vpu():
        compute_dtype = jnp.bfloat16
    else:
        compute_dtype = jnp.float32

    # Request only what the kernel needs (double-buffered input slabs plus
    # headroom for compiler temporaries) -- never all of v7x's 64 MiB.
    vmem_cap = _vmem_capacity_bytes()
    tile_bytes = tm * B * itemsize
    vmem_limit = int(min(0.8 * vmem_cap, 4 * tile_bytes + 8 * 1024 * 1024))
    vmem_limit = max(vmem_limit, 16 * 1024 * 1024)

    kernel = functools.partial(
        _triplet_loss_kernel,
        margin=float(margin), rows_total=B, tile_rows=tm,
        use_diag_block=use_diag_block, compute_dtype=compute_dtype)

    partials = pl.pallas_call(
        kernel,
        out_shape=jax.ShapeDtypeStruct((num_tiles, 8, 128), jnp.float32),
        grid_spec=pltpu.PrefetchScalarGridSpec(
            num_scalar_prefetch=0,
            grid=(num_tiles,),
            # (TM, B): second dim equals the full array dim, first dim is a
            # multiple of 8 (or equals B), so the (8, 128) block rule holds.
            in_specs=[pl.BlockSpec((tm, B), lambda i: (i, 0))],
            # Each grid step owns its own (8, 128) output block -> row axis can
            # stay "parallel" (megacore sharding on v7x).
            out_specs=pl.BlockSpec((1, 8, 128), lambda i: (i, 0, 0)),
        ),
        compiler_params=pltpu.CompilerParams(
            dimension_semantics=("parallel",),
            vmem_limit_bytes=vmem_limit,
        ),
        cost_estimate=pl.CostEstimate(
            flops=4 * B * B,
            transcendentals=0,
            bytes_accessed=B * B * itemsize + num_tiles * 8 * 128 * 4,
        ),
    )(sim_matrix)

    # Final mean over per-tile partial sums (tiny JAX reduction).
    return jnp.sum(partials[:, 0, 0]) / jnp.float32(B)


def _triplet_loss_ref(sim_matrix, margin=1.0):
    """Pure-JAX reference mirroring the PyTorch code, for verification."""
    B = sim_matrix.shape[0]
    sim = sim_matrix.astype(jnp.float32)
    pos = jnp.diagonal(sim)
    eye = jnp.eye(B, dtype=bool)
    neg = jnp.max(jnp.where(eye, -jnp.inf, sim), axis=1)
    return jnp.mean(jnp.maximum(pos - neg + margin, 0.0))


if __name__ == "__main__":
    # Case 1: small batch, single full-height block.
    B1 = 8
    sim1 = jax.random.normal(jax.random.PRNGKey(0), (B1, B1), dtype=jnp.float32)
    loss1 = jax.block_until_ready(triplet_loss(sim1, margin=1.0))
    ref1 = jax.block_until_ready(_triplet_loss_ref(sim1, margin=1.0))
    assert jnp.allclose(loss1, ref1, atol=1e-5, rtol=1e-5), (loss1, ref1)

    # Case 2: multi-tile path with an exact but non-lane-aligned tiling
    # (exercises the full-width pos fallback + per-tile masks).
    B2 = 48
    sim2 = jax.random.normal(jax.random.PRNGKey(1), (B2, B2), dtype=jnp.float32)
    loss2 = jax.block_until_ready(triplet_loss(sim2, margin=1.0, tile_rows=16))
    ref2 = jax.block_until_ready(_triplet_loss_ref(sim2, margin=1.0))
    assert jnp.allclose(loss2, ref2, atol=1e-5, rtol=1e-5), (loss2, ref2)

    # Case 3: partial final tile (exercises padded-row masking).
    B3 = 40
    sim3 = jax.random.normal(jax.random.PRNGKey(2), (B3, B3), dtype=jnp.float32)
    loss3 = jax.block_until_ready(triplet_loss(sim3, margin=1.0, tile_rows=16))
    ref3 = jax.block_until_ready(_triplet_loss_ref(sim3, margin=1.0))
    assert jnp.allclose(loss3, ref3, atol=1e-5, rtol=1e-5), (loss3, ref3)

    # Case 4: auto tiling -> two 128-row tiles, diag-block pos path + 2 grid steps.
    B4 = 256
    sim4 = jax.random.normal(jax.random.PRNGKey(3), (B4, B4), dtype=jnp.float32)
    loss4 = jax.block_until_ready(triplet_loss(sim4, margin=1.0))
    ref4 = jax.block_until_ready(_triplet_loss_ref(sim4, margin=1.0))
    assert jnp.allclose(loss4, ref4, atol=1e-5, rtol=1e-5), (loss4, ref4)

    # Case 5: bf16 input (bf16-native select/max on v6e/v7x; f32 upcast on v5e).
    B5 = 64
    sim5 = jax.random.normal(jax.random.PRNGKey(4), (B5, B5),
                             dtype=jnp.float32).astype(jnp.bfloat16)
    loss5 = jax.block_until_ready(triplet_loss(sim5, margin=1.0))
    ref5 = jax.block_until_ready(_triplet_loss_ref(sim5, margin=1.0))
    assert jnp.allclose(loss5, ref5, atol=2e-3, rtol=2e-3), (loss5, ref5)

    print("KERNEL_OK")
</pallas_src>

<mosaic_0001>
module attributes {stable_mosaic.version = 11 : i64} {
  func.func @_triplet_loss_kernel(%arg0: i32, %arg1: memref<8x8xf32, #tpu.memory_space<vmem>>, %arg2: memref<1x8x128xf32, #tpu.memory_space<vmem>>) attributes {dimension_semantics = [#tpu.dimension_semantics<parallel>], iteration_bounds = array<i64: 1>, scalar_prefetch = 0 : i64, scratch_operands = 0 : i64, tpu.core_type = #tpu.core_type<tc>, window_params = [{transform_indices = @transform_0, window_bounds = array<i64: 8, 8>}, {transform_indices = @transform_1, window_bounds = array<i64: 1, 8, 128>}]} {
    %c0 = arith.constant 0 : index
    %c0_0 = arith.constant 0 : index
    %0 = vector.load %arg1[%c0, %c0_0] : memref<8x8xf32, #tpu.memory_space<vmem>>, vector<8x8xf32>
    %1 = tpu.iota {dimensions = array<i32: 0>} : vector<8x8xi32>
    %2 = tpu.iota {dimensions = array<i32: 1>} : vector<8x8xi32>
    %c8_i32 = arith.constant 8 : i32
    %3 = arith.muli %arg0, %c8_i32 : i32
    %4 = vector.broadcast %3 : i32 to vector<8x8xi32>
    %5 = arith.addi %1, %4 : vector<8x8xi32>
    %6 = arith.cmpi eq, %2, %5 : vector<8x8xi32>
    %cst = arith.constant -3.40282347E+38 : f32
    %7 = vector.broadcast %cst : f32 to vector<8x8xf32>
    %8 = arith.select %6, %7, %0 : vector<8x8xi1>, vector<8x8xf32>
    %cst_1 = arith.constant dense<0xFF800000> : vector<8xf32>
    %9 = vector.multi_reduction <maximumf>, %8, %cst_1 [1] : vector<8x8xf32> to vector<8xf32>
    %10 = vector.shape_cast %9 : vector<8xf32> to vector<8x1xf32>
    %cst_2 = arith.constant 0.000000e+00 : f32
    %11 = vector.broadcast %cst_2 : f32 to vector<8x8xf32>
    %12 = arith.select %6, %0, %11 : vector<8x8xi1>, vector<8x8xf32>
    %cst_3 = arith.constant dense<0.000000e+00> : vector<8xf32>
    %13 = vector.multi_reduction <add>, %12, %cst_3 [1] : vector<8x8xf32> to vector<8xf32>
    %14 = vector.shape_cast %13 : vector<8xf32> to vector<8x1xf32>
    %15 = arith.subf %14, %10 : vector<8x1xf32>
    %cst_4 = arith.constant 1.000000e+00 : f32
    %16 = vector.broadcast %cst_4 : f32 to vector<8x1xf32>
    %17 = arith.addf %15, %16 : vector<8x1xf32>
    %cst_5 = arith.constant 0.000000e+00 : f32
    %18 = vector.broadcast %cst_5 : f32 to vector<8x1xf32>
    %19 = arith.maximumf %17, %18 : vector<8x1xf32>
    %20 = vector.extract_strided_slice %5 {offsets = [0, 0], sizes = [8, 1], strides = [1, 1]} : vector<8x8xi32> to vector<8x1xi32>
    %c8_i32_6 = arith.constant 8 : i32
    %21 = vector.broadcast %c8_i32_6 : i32 to vector<8x1xi32>
    %22 = arith.cmpi slt, %20, %21 : vector<8x1xi32>
    %cst_7 = arith.constant 0.000000e+00 : f32
    %23 = vector.broadcast %cst_7 : f32 to vector<8x1xf32>
    %24 = arith.select %22, %19, %23 : vector<8x1xi1>, vector<8x1xf32>
    %25 = vector.shape_cast %24 : vector<8x1xf32> to vector<1x8x1xf32>
    %cst_8 = arith.constant dense<0.000000e+00> : vector<1xf32>
    %26 = vector.multi_reduction <add>, %25, %cst_8 [1, 2] : vector<1x8x1xf32> to vector<1xf32>
    %27 = vector.shape_cast %26 : vector<1xf32> to vector<1x1x1xf32>
    %28 = vector.extract %27[0, 0, 0] : f32 from vector<1x1x1xf32>
    %29 = vector.broadcast %28 : f32 to vector<1x8x128xf32>
    %c0_9 = arith.constant 0 : index
    %c0_10 = arith.constant 0 : index
    %c0_11 = arith.constant 0 : index
    %30 = vector.load %arg2[%c0_9, %c0_10, %c0_11] : memref<1x8x128xf32, #tpu.memory_space<vmem>>, vector<1x8x128xf32>
    tpu.vector_store %arg2[%c0_9, %c0_10, %c0_11], %29 {strides = array<i32>} : memref<1x8x128xf32, #tpu.memory_space<vmem>>, vector<1x8x128xf32>,
    return
  }
  func.func @transform_0(%arg0: i32) -> (i32, i32) {
    %c0_i32 = arith.constant 0 : i32
    %c0_i32_0 = arith.constant 0 : i32
    return %arg0, %c0_i32 : i32, i32
  }
  func.func @transform_1(%arg0: i32) -> (i32, i32, i32) {
    %c0_i32 = arith.constant 0 : i32
    %c0_i32_0 = arith.constant 0 : i32
    %c0_i32_1 = arith.constant 0 : i32
    return %arg0, %c0_i32, %c0_i32_0 : i32, i32, i32
  }
}

</mosaic_0001>

<llo_original>
// kernel: tpu_custom_call.1
$region0: #{tpu_custom_call.1}
  #allocation0 [shape = 'u32[]', space=smem, size = 0x4, offset = 0x4, fixed_abs, tag = 'smem constant byte address 0x4 - core index']
  #allocation1 [shape = 'u32[144,128]{1,0:T(1,128)}', space=vmem, size = 0x12000, scoped, tag = 'internal scratch']
  %s0 = inlined_call_operand.hbm [shape: f32[8,8], index: 0, kind: input, shape index: {}]
  %s1 = inlined_call_operand.hbm [shape: f32[1,8,128], index: 1, kind: output, shape index: {}]
  %s2 = sld [smem:[#allocation0]]
  $region18: #{tpu_custom_call.1} parent=0
    _
  %s4 = ssub.s32 1, %s2
  %s5 = scalar_select 0, %s4, %s2
  $region1: #{tpu_custom_call.1} parent=0
    #allocation2 [shape = 'u8[4096]{0}', space=vmem, size = 0x1000, scoped, tag = 'input window, operand 0, single buffered']
    #allocation3 [shape = 's32[1]{0}', space=sflag, size = 0x4, scoped, tag = 'scoped memory for tpu_custom_call.1']
    #allocation4 [shape = 's32[1]{0}', space=sflag, size = 0x4, scoped, tag = 'scoped memory for tpu_custom_call.1']
    #allocation5 [shape = 'u8[4096]{0}', space=vmem, size = 0x1000, scoped, tag = 'output window, operand 0, single buffered']
    %6 = vsyncpa [#allocation3], 0
    %7 = vsyncpa [#allocation4], 0
    // Predicated region
    $region2: #{tpu_custom_call.1} parent=1 // pred_check
      _
    $region3: #{tpu_custom_call.1} parent=1 // pred_check_branch
      %9 = sbr.rel (0) target = $region5
    $region4: #{tpu_custom_call.1} parent=1 // pred_region
      %s11 = ssub.s32 128, 128
      %12 = vsyncadd [#allocation3], %s11
      %s14 = sshll.u32 [#allocation2], 4
      %s15 = int_to_ptr.vmem [resolvable:$true] %s14
      %17 = dma.hbm_to_vmem [thread:$0]  %s0, 128, %s15, [#allocation3]
    $region5: #{tpu_custom_call.1} parent=1 // pred_fallthru
      _
    // Predicated region
    $region6: #{tpu_custom_call.1} parent=1 // pred_check
      _
    $region7: #{tpu_custom_call.1} parent=1 // pred_check_branch
      %19 = sbr.rel (0) target = $region9
    $region8: #{tpu_custom_call.1} parent=1 // pred_region
      %20 = dma.done [#allocation3], 128
    $region9: #{tpu_custom_call.1} parent=1 // pred_fallthru
      _
    %v21 = vld [vmem:[#allocation2] sm:$0xff]
    %v22 = vlaneseq
    %v23 = vshrl.u32 %v22, 7
    %v24 = vlaneseq
    %v25 = vand.u32 %v24, 127
    %s26 = smul.u32 0, 8
    %v27 = vstv %s26
    %v28 = vadd.s32 %v23, %v27
    %vm29 = vcmp.eq.s32.totalorder %v25, %v28
    %v30 = vsel %vm29, -3.4028235e+38, %v21
    %vm31 = vcmask 64512
    %v32 = vsel %vm31, %v30, -inf
    %33 = vmax.xlane.f32.xlu0 %v32
    %v34 = vpop.xlane.xlu0 %33
    %v35 = vsel %vm29, %v21, 0.0
    %v36 = vsel %vm31, %v35, 0.0
    %37 = vadd.xlane.f32.xlu0 %v36
    %v38 = vpop.xlane.xlu0 %37
    %v39 = vsub.f32 %v38, %v34
    %v40 = vadd.f32 %v39, 1.0
    %v41 = vmax.f32 %v40, 0.0
    %vm42 = vcmp.lt.s32.totalorder %v28, 8
    %v43 = vsel %vm42, %v41, 0.0
    %vm44 = vcmask 7168
    %v45 = vsel %vm44, %v43, 0.0
    %46 = vadd.xlane.f32.xlu0 %v45
    %v47 = vpop.xlane.xlu0 %46
    %v48 = vrot.slane %v47, 4
    %v49 = vadd.f32 %v47, %v48
    %v50 = vrot.slane %v49, 2
    %v51 = vadd.f32 %v49, %v50
    %v52 = vrot.slane %v51, 1
    %v53 = vadd.f32 %v51, %v52
    %s54 = vtos %v53
    %v55 = vstv %s54
    %56 = vst [vmem:[#allocation5] sm:$0xff] %v55
    // Predicated region
    $region10: #{tpu_custom_call.1} parent=1 // pred_check
      _
    $region11: #{tpu_custom_call.1} parent=1 // pred_check_branch
      %58 = sbr.rel (0) target = $region13
    $region12: #{tpu_custom_call.1} parent=1 // pred_region
      %s60 = ssub.s32 128, 128
      %61 = vsyncadd [#allocation4], %s60
      %s63 = sshll.u32 [#allocation5], 4
      %s64 = int_to_ptr.vmem [resolvable:$true] %s63
      %66 = dma.vmem_to_hbm [thread:$0]  %s64, 128, %s1, [#allocation4]
    $region13: #{tpu_custom_call.1} parent=1 // pred_fallthru
      _
    // Predicated region
    $region14: #{tpu_custom_call.1} parent=1 // pred_check
      _
    $region15: #{tpu_custom_call.1} parent=1 // pred_check_branch
      %68 = sbr.rel (0) target = $region17
    $region16: #{tpu_custom_call.1} parent=1 // pred_region
      %69 = dma.done [#allocation4], 128
    $region17: #{tpu_custom_call.1} parent=1 // pred_fallthru
      _
    %70 = vsyncpa [#allocation3], 1
    %71 = vsyncpa [#allocation4], 1

</llo_original>
